<compile_context>
chip_gen: v6e
topology: v6e:2x2x1
jax: 0.10.0
libtpu: 0.0.40
codegen_flags: <defaults>
</compile_context>

<pallas_src>
import functools

import jax
import jax.numpy as jnp
from jax.experimental import pallas as pl
from jax.experimental.pallas import tpu as pltpu


def _round_up(x, m):
    return ((x + m - 1) // m) * m


def _pick_block(dim, target, multiple):
    """Largest tile <= target (a multiple of `multiple`) that adds no padding
    beyond dim's minimal alignment padding; otherwise the least-padding tile."""
    dim_aligned = _round_up(max(int(dim), 1), multiple)
    target = max(multiple, min(_round_up(int(target), multiple), dim_aligned))
    best_bm, best_waste = multiple, None
    bm = target
    while bm >= multiple:
        waste = _round_up(dim, bm) - dim_aligned
        if waste == 0:
            return bm
        if best_waste is None or waste < best_waste:
            best_bm, best_waste = bm, waste
        bm -= multiple
    return best_bm


def _vmem_budget_bytes():
    """(vmem_limit_bytes, usable tile budget) per TPU generation."""
    try:
        cap = int(pltpu.get_tpu_info().vmem_capacity_bytes)
    except Exception:  # info query unavailable -> conservative fallback
        cap = 0
    if cap <= 0:
        cap = 64 << 20                           # v7x-sized fallback
    limit = int(min(0.75 * cap, 100 << 20))      # ~48 MiB v7x, ~96 MiB v5e/v6e
    budget = max(limit - (4 << 20), 8 << 20)     # headroom for compiler scratch
    return limit, budget


def _pad2d(arr, rows, cols):
    r0, c0 = arr.shape
    if (rows, cols) == (r0, c0):
        return arr
    return jnp.pad(arr, ((0, rows - r0), (0, cols - c0)))


# --------------------------------------------------------------------------
# Kernels
# --------------------------------------------------------------------------
def _lora_fused_kernel(x_ref, a_ref, b_ref, o_ref, acc_ref, *,
                       scaling, block_k, a_resident):
    """One (block_m, block_k) step of scaling * (x @ A) @ B."""
    k = pl.program_id(1)

    @pl.when(k == 0)
    def _():
        acc_ref[...] = jnp.zeros_like(acc_ref)

    if a_resident:
        a_blk = a_ref[pl.ds(pl.multiple_of(k * block_k, block_k), block_k), :]
    else:
        a_blk = a_ref[...]
    acc_ref[...] += jnp.dot(x_ref[...], a_blk,
                            preferred_element_type=jnp.float32)

    @pl.when(k == pl.num_programs(1) - 1)
    def _():
        # Keep the accumulator in f32 through the tiny second matmul.
        out = jnp.dot(acc_ref[...], b_ref[...].astype(jnp.float32),
                      preferred_element_type=jnp.float32)
        o_ref[...] = (scaling * out).astype(o_ref.dtype)


def _xa_kernel(x_ref, a_ref, o_ref, *, block_k, a_resident):
    """Split path, kernel 1: accumulate x @ A into the resident f32 output."""
    k = pl.program_id(1)

    @pl.when(k == 0)
    def _():
        o_ref[...] = jnp.zeros_like(o_ref)

    if a_resident:
        a_blk = a_ref[pl.ds(pl.multiple_of(k * block_k, block_k), block_k), :]
    else:
        a_blk = a_ref[...]
    o_ref[...] += jnp.dot(x_ref[...], a_blk, preferred_element_type=jnp.float32)


def _xab_kernel(xa_ref, b_ref, o_ref, *, scaling):
    """Split path, kernel 2: out = scaling * xa @ B, tiled over (M, out_dim)."""
    out = jnp.dot(xa_ref[...], b_ref[...].astype(jnp.float32),
                  preferred_element_type=jnp.float32)
    o_ref[...] = (scaling * out).astype(o_ref.dtype)


# --------------------------------------------------------------------------
# Wrapper
# --------------------------------------------------------------------------
def lora_forward(x, A, B, *, alpha, rank, block_m=None, block_k=None,
                 block_n=None, split=None, a_resident=None):
    """scaling * (dropout(x) @ A @ B); x: (..., in_dim) -> (..., out_dim).

    Dropout is eval-mode (identity).  A / B keep their native dtypes; the
    output dtype matches x.
    """
    scaling = float(alpha) / float(rank)
    in_dim, r = A.shape
    r2, out_dim = B.shape
    assert r == rank and r2 == rank and x.shape[-1] == in_dim

    dtype = x.dtype
    assert dtype in (jnp.float32, jnp.bfloat16), "only f32/bf16 x supported"
    lead_shape = x.shape[:-1]
    M = 1
    for d in lead_shape:
        M *= d

    lane = 128
    sub = 8 if dtype == jnp.float32 else 16
    x_item = jnp.dtype(dtype).itemsize
    a_item = jnp.dtype(A.dtype).itemsize
    b_item = jnp.dtype(B.dtype).itemsize
    o_item = x_item

    rank_p = _round_up(rank, lane)
    out_dim_p = _round_up(out_dim, lane)

    vmem_limit, budget = _vmem_budget_bytes()

    # ---- K tile ---------------------------------------------------------
    target_bk = block_k if block_k is not None else 1024
    bk = _pick_block(in_dim, target_bk, lane)
    in_dim_p = _round_up(in_dim, bk)
    num_k = in_dim_p // bk

    # ---- A residency ------------------------------------------------------
    if a_resident is None:
        a_resident = (in_dim_p * rank_p * a_item) <= (4 << 20)

    # ---- M tile target (megacore: keep >= 2 parallel steps when possible) --
    if block_m is not None:
        target_bm = block_m
    else:
        target_bm = 1024 if dtype == jnp.bfloat16 else 512
        M_aligned = _round_up(M, sub)
        target_bm = min(target_bm,
                        max(256, _round_up((M_aligned + 1) // 2, sub)))

    # ---- fused vs. split decision ----------------------------------------
    if split is None:
        out_slab_ref = 2 * min(512, _round_up(M, sub)) * out_dim_p * o_item
        split = out_slab_ref > budget // 2

    x2d = x.reshape(M, in_dim)

    # ======================================================================
    # Fused single-kernel path
    # ======================================================================
    if not split:
        def footprint(bm):
            f = 2 * bm * bk * x_item                                   # x
            f += (2 * in_dim_p * rank_p * a_item) if a_resident \
                else (2 * bk * rank_p * a_item)                        # A
            f += 2 * rank_p * out_dim_p * b_item                       # B
            f += 2 * bm * out_dim_p * o_item                           # out
            f += bm * rank_p * 4                                       # acc
            return f

        bm = _pick_block(M, target_bm, sub)
        while footprint(bm) > budget and bm > sub:
            bm = _pick_block(M, max(sub, (bm // 2) // sub * sub), sub)

        M_p = _round_up(M, bm)
        grid = (M_p // bm, num_k)

        x_p = _pad2d(x2d, M_p, in_dim_p)
        A_p = _pad2d(A, in_dim_p, rank_p)
        B_p = _pad2d(B, rank_p, out_dim_p)

        if a_resident:
            a_spec = pl.BlockSpec((in_dim_p, rank_p), lambda i, k: (0, 0))
        else:
            a_spec = pl.BlockSpec((bk, rank_p), lambda i, k: (k, 0))
        b_spec = pl.BlockSpec((rank_p, out_dim_p), lambda i, k: (0, 0))

        cost = pl.CostEstimate(
            flops=2 * M * in_dim * rank + 2 * M * rank * out_dim,
            transcendentals=0,
            bytes_accessed=(M * in_dim * x_item + in_dim * rank * a_item +
                            rank * out_dim * b_item + M * out_dim * o_item))

        out2d = pl.pallas_call(
            functools.partial(_lora_fused_kernel, scaling=scaling,
                              block_k=bk, a_resident=a_resident),
            out_shape=jax.ShapeDtypeStruct((M_p, out_dim_p), dtype),
            grid_spec=pltpu.PrefetchScalarGridSpec(
                num_scalar_prefetch=0,
                grid=grid,
                in_specs=[
                    pl.BlockSpec((bm, bk), lambda i, k: (i, k)),
                    a_spec,
                    b_spec,
                ],
                out_specs=pl.BlockSpec((bm, out_dim_p), lambda i, k: (i, 0)),
                scratch_shapes=[pltpu.VMEM((bm, rank_p), jnp.float32)],
            ),
            compiler_params=pltpu.CompilerParams(
                dimension_semantics=("parallel", "arbitrary"),
                vmem_limit_bytes=vmem_limit,
            ),
            cost_estimate=cost,
        )(x_p, A_p, B_p)

        out2d = out2d[:M, :out_dim]
        return out2d.reshape(*lead_shape, out_dim)

    # ======================================================================
    # Split path: (x @ A) reduction kernel, then (xa @ B) tiled over out_dim
    # ======================================================================
    def footprint1(bm):
        f = 2 * bm * bk * x_item
        f += (2 * in_dim_p * rank_p * a_item) if a_resident \
            else (2 * bk * rank_p * a_item)
        f += 2 * bm * rank_p * 4          # resident f32 output block
        return f

    bm = _pick_block(M, target_bm, sub)
    while footprint1(bm) > budget and bm > sub:
        bm = _pick_block(M, max(sub, (bm // 2) // sub * sub), sub)

    M_p = _round_up(M, bm)
    x_p = _pad2d(x2d, M_p, in_dim_p)
    A_p = _pad2d(A, in_dim_p, rank_p)

    if a_resident:
        a_spec = pl.BlockSpec((in_dim_p, rank_p), lambda i, k: (0, 0))
    else:
        a_spec = pl.BlockSpec((bk, rank_p), lambda i, k: (k, 0))

    xa = pl.pallas_call(
        functools.partial(_xa_kernel, block_k=bk, a_resident=a_resident),
        out_shape=jax.ShapeDtypeStruct((M_p, rank_p), jnp.float32),
        grid_spec=pltpu.PrefetchScalarGridSpec(
            num_scalar_prefetch=0,
            grid=(M_p // bm, num_k),
            in_specs=[pl.BlockSpec((bm, bk), lambda i, k: (i, k)), a_spec],
            out_specs=pl.BlockSpec((bm, rank_p), lambda i, k: (i, 0)),
        ),
        compiler_params=pltpu.CompilerParams(
            dimension_semantics=("parallel", "arbitrary"),
            vmem_limit_bytes=vmem_limit,
        ),
        cost_estimate=pl.CostEstimate(
            flops=2 * M * in_dim * rank, transcendentals=0,
            bytes_accessed=(M * in_dim * x_item + in_dim * rank * a_item +
                            M * rank_p * 4)),
    )(x_p, A_p)

    target_bn = block_n if block_n is not None else 2048
    bn = _pick_block(out_dim, target_bn, lane)

    def footprint2(bn_):
        return (2 * bm * rank_p * 4 + 2 * rank_p * bn_ * b_item +
                2 * bm * bn_ * o_item)

    while footprint2(bn) > budget and bn > lane:
        bn = _pick_block(out_dim, max(lane, (bn // 2) // lane * lane), lane)

    out_dim_pn = _round_up(out_dim, bn)
    B_p = _pad2d(B, rank_p, out_dim_pn)

    out2d = pl.pallas_call(
        functools.partial(_xab_kernel, scaling=scaling),
        out_shape=jax.ShapeDtypeStruct((M_p, out_dim_pn), dtype),
        grid_spec=pltpu.PrefetchScalarGridSpec(
            num_scalar_prefetch=0,
            grid=(M_p // bm, out_dim_pn // bn),
            in_specs=[
                pl.BlockSpec((bm, rank_p), lambda i, n: (i, 0)),
                pl.BlockSpec((rank_p, bn), lambda i, n: (0, n)),
            ],
            out_specs=pl.BlockSpec((bm, bn), lambda i, n: (i, n)),
        ),
        compiler_params=pltpu.CompilerParams(
            dimension_semantics=("parallel", "parallel"),
            vmem_limit_bytes=vmem_limit,
        ),
        cost_estimate=pl.CostEstimate(
            flops=2 * M * rank * out_dim, transcendentals=0,
            bytes_accessed=(M * rank_p * 4 + rank * out_dim * b_item +
                            M * out_dim * o_item)),
    )(xa, B_p)

    out2d = out2d[:M, :out_dim]
    return out2d.reshape(*lead_shape, out_dim)


# --------------------------------------------------------------------------
# Self-test
# --------------------------------------------------------------------------
if __name__ == "__main__":
    key = jax.random.PRNGKey(0)
    keys = jax.random.split(key, 8)

    # --- 1. small shapes consistent with the module ----------------------
    batch, seq = 2, 8
    in_dim, out_dim, rank, alpha = 32, 32, 4, 8
    std_dev = 1.0 / jnp.sqrt(jnp.float32(rank))

    x = jax.random.normal(keys[0], (batch, seq, in_dim), dtype=jnp.float32)
    A = jax.random.normal(keys[1], (in_dim, rank), dtype=jnp.float32) * std_dev
    B0 = jnp.zeros((rank, out_dim), dtype=jnp.float32)   # as in __init__

    out = jax.block_until_ready(lora_forward(x, A, B0, alpha=alpha, rank=rank))
    ref0 = (alpha / rank) * (x @ A @ B0)
    assert out.shape == ref0.shape
    assert jnp.allclose(out, ref0, atol=1e-4), "mismatch with zero-init B"

    B1 = jax.random.normal(keys[2], (rank, out_dim), dtype=jnp.float32) * 0.1
    out = jax.block_until_ready(lora_forward(x, A, B1, alpha=alpha, rank=rank))
    ref1 = (alpha / rank) * (x @ A @ B1)
    assert jnp.allclose(out, ref1, atol=1e-3), "mismatch with random B"

    # --- 2. multi-step grid; resident-A and streamed-A paths -------------
    M2, in2, out2, rank2, alpha2 = 256, 384, 256, 8, 16
    x2 = jax.random.normal(keys[3], (M2, in2), dtype=jnp.float32)
    A2 = jax.random.normal(keys[4], (in2, rank2), dtype=jnp.float32) / jnp.sqrt(
        jnp.float32(rank2))
    B2 = jax.random.normal(keys[5], (rank2, out2), dtype=jnp.float32) * 0.1
    want2 = (alpha2 / rank2) * (x2 @ A2 @ B2)
    for resident in (True, False):
        got2 = jax.block_until_ready(
            lora_forward(x2, A2, B2, alpha=alpha2, rank=rank2,
                         block_m=64, block_k=128, a_resident=resident))
        assert jnp.allclose(got2, want2, atol=2e-3, rtol=1e-3), \
            f"mismatch (tiled, a_resident={resident})"

    # --- 3. ragged shapes (non-aligned M / in_dim / out_dim) -------------
    x3 = jax.random.normal(keys[6], (3, 50, 200), dtype=jnp.float32)
    A3 = jax.random.normal(keys[7], (200, 4), dtype=jnp.float32) * 0.5
    B3 = jax.random.normal(keys[2], (4, 72), dtype=jnp.float32) * 0.1
    got3 = jax.block_until_ready(lora_forward(x3, A3, B3, alpha=8, rank=4))
    want3 = (8 / 4) * (x3 @ A3 @ B3)
    assert got3.shape == want3.shape
    assert jnp.allclose(got3, want3, atol=2e-3, rtol=1e-3), "mismatch (ragged)"

    # --- 4. forced two-kernel split path (large-out_dim structure) -------
    got4 = jax.block_until_ready(
        lora_forward(x2, A2, B2, alpha=alpha2, rank=rank2,
                     block_m=64, block_k=128, block_n=128, split=True))
    assert jnp.allclose(got4, want2, atol=2e-3, rtol=1e-3), "mismatch (split)"

    # --- 5. bf16 x with bf16 params, and bf16 x with f32 params ----------
    x_bf = x.astype(jnp.bfloat16)
    out_bf = jax.block_until_ready(
        lora_forward(x_bf, A.astype(jnp.bfloat16), B1.astype(jnp.bfloat16),
                     alpha=alpha, rank=rank))
    assert out_bf.dtype == jnp.bfloat16
    assert jnp.all(jnp.isfinite(out_bf.astype(jnp.float32)))
    assert jnp.allclose(out_bf.astype(jnp.float32), ref1, atol=0.1), \
        "bf16 path mismatch"

    out_mix = jax.block_until_ready(
        lora_forward(x_bf, A, B1, alpha=alpha, rank=rank))  # f32 adapters stay f32
    assert out_mix.dtype == jnp.bfloat16
    assert jnp.allclose(out_mix.astype(jnp.float32), ref1, atol=0.08), \
        "mixed-precision path mismatch"

    print("KERNEL_OK")
</pallas_src>

<mosaic_0001>
module attributes {stable_mosaic.version = 11 : i64} {
  func.func @_lora_fused_kernel(%arg0: i32, %arg1: i32, %arg2: memref<16x128xf32, #tpu.memory_space<vmem>>, %arg3: memref<128x128xf32, #tpu.memory_space<vmem>>, %arg4: memref<128x128xf32, #tpu.memory_space<vmem>>, %arg5: memref<16x128xf32, #tpu.memory_space<vmem>>, %arg6: memref<16x128xf32, #tpu.memory_space<vmem>>) attributes {dimension_semantics = [#tpu.dimension_semantics<parallel>, #tpu.dimension_semantics<arbitrary>], iteration_bounds = array<i64: 1, 1>, scalar_prefetch = 0 : i64, scratch_operands = 1 : i64, tpu.core_type = #tpu.core_type<tc>, window_params = [{transform_indices = @transform_0, window_bounds = array<i64: 16, 128>}, {pipeline_mode = #tpu.pipeline_mode<synchronous>, transform_indices = @transform_1, window_bounds = array<i64: 128, 128>}, {pipeline_mode = #tpu.pipeline_mode<synchronous>, transform_indices = @transform_2, window_bounds = array<i64: 128, 128>}, {transform_indices = @transform_3, window_bounds = array<i64: 16, 128>}]} {
    %c0_i32 = arith.constant 0 : i32
    %0 = arith.cmpi eq, %arg1, %c0_i32 : i32
    %1 = arith.extui %0 : i1 to i32
    %c0_i32_0 = arith.constant 0 : i32
    %2 = arith.cmpi ne, %1, %c0_i32_0 : i32
    scf.if %2 {
      %cst_9 = arith.constant 0.000000e+00 : f32
      %15 = vector.broadcast %cst_9 : f32 to vector<16x128xf32>
      %c0_10 = arith.constant 0 : index
      %c0_11 = arith.constant 0 : index
      %16 = vector.load %arg6[%c0_10, %c0_11] : memref<16x128xf32, #tpu.memory_space<vmem>>, vector<16x128xf32>
      tpu.vector_store %arg6[%c0_10, %c0_11], %15 {strides = array<i32>} : memref<16x128xf32, #tpu.memory_space<vmem>>, vector<16x128xf32>,
    } else {
    }
    %c128_i32 = arith.constant 128 : i32
    %3 = arith.muli %arg1, %c128_i32 : i32
    %4 = tpu.assume_multiple %3, 128 : i32
    %5 = arith.index_cast %4 : i32 to index
    %c0 = arith.constant 0 : index
    %6 = vector.load %arg3[%5, %c0] : memref<128x128xf32, #tpu.memory_space<vmem>>, vector<128x128xf32>
    %c0_1 = arith.constant 0 : index
    %c0_2 = arith.constant 0 : index
    %7 = vector.load %arg6[%c0_1, %c0_2] : memref<16x128xf32, #tpu.memory_space<vmem>>, vector<16x128xf32>
    %c0_3 = arith.constant 0 : index
    %c0_4 = arith.constant 0 : index
    %8 = vector.load %arg2[%c0_3, %c0_4] : memref<16x128xf32, #tpu.memory_space<vmem>>, vector<16x128xf32>
    %cst = arith.constant dense<0.000000e+00> : vector<16x128xf32>
    %9 = tpu.matmul %8, %6, %cst {dimension_numbers = #tpu.dot_dimension_numbers<[1], [0], [0], [1], [0, 0, 1, 1], [], []>} : vector<16x128xf32>, vector<128x128xf32>, vector<16x128xf32> -> vector<16x128xf32>
    %10 = arith.addf %7, %9 : vector<16x128xf32>
    %c0_5 = arith.constant 0 : index
    %c0_6 = arith.constant 0 : index
    %11 = vector.load %arg6[%c0_5, %c0_6] : memref<16x128xf32, #tpu.memory_space<vmem>>, vector<16x128xf32>
    tpu.vector_store %arg6[%c0_5, %c0_6], %10 {strides = array<i32>} : memref<16x128xf32, #tpu.memory_space<vmem>>, vector<16x128xf32>,
    %c0_i32_7 = arith.constant 0 : i32
    %12 = arith.cmpi eq, %arg1, %c0_i32_7 : i32
    %13 = arith.extui %12 : i1 to i32
    %c0_i32_8 = arith.constant 0 : i32
    %14 = arith.cmpi ne, %13, %c0_i32_8 : i32
    scf.if %14 {
      %c0_9 = arith.constant 0 : index
      %c0_10 = arith.constant 0 : index
      %15 = vector.load %arg6[%c0_9, %c0_10] : memref<16x128xf32, #tpu.memory_space<vmem>>, vector<16x128xf32>
      %c0_11 = arith.constant 0 : index
      %c0_12 = arith.constant 0 : index
      %16 = vector.load %arg4[%c0_11, %c0_12] : memref<128x128xf32, #tpu.memory_space<vmem>>, vector<128x128xf32>
      %cst_13 = arith.constant dense<0.000000e+00> : vector<16x128xf32>
      %17 = tpu.matmul %15, %16, %cst_13 {dimension_numbers = #tpu.dot_dimension_numbers<[1], [0], [0], [1], [0, 0, 1, 1], [], []>} : vector<16x128xf32>, vector<128x128xf32>, vector<16x128xf32> -> vector<16x128xf32>
      %cst_14 = arith.constant 2.000000e+00 : f32
      %18 = vector.broadcast %cst_14 : f32 to vector<16x128xf32>
      %19 = arith.mulf %18, %17 : vector<16x128xf32>
      %c0_15 = arith.constant 0 : index
      %c0_16 = arith.constant 0 : index
      %20 = vector.load %arg5[%c0_15, %c0_16] : memref<16x128xf32, #tpu.memory_space<vmem>>, vector<16x128xf32>
      tpu.vector_store %arg5[%c0_15, %c0_16], %19 {strides = array<i32>} : memref<16x128xf32, #tpu.memory_space<vmem>>, vector<16x128xf32>,
    } else {
    }
    return
  }
  func.func @transform_0(%arg0: i32, %arg1: i32) -> (i32, i32) {
    %c0_i32 = arith.constant 0 : i32
    return %arg0, %arg1 : i32, i32
  }
  func.func @transform_1(%arg0: i32, %arg1: i32) -> (i32, i32) {
    %c0_i32 = arith.constant 0 : i32
    %c0_i32_0 = arith.constant 0 : i32
    %c0_i32_1 = arith.constant 0 : i32
    return %c0_i32, %c0_i32_0 : i32, i32
  }
  func.func @transform_2(%arg0: i32, %arg1: i32) -> (i32, i32) {
    %c0_i32 = arith.constant 0 : i32
    %c0_i32_0 = arith.constant 0 : i32
    %c0_i32_1 = arith.constant 0 : i32
    return %c0_i32, %c0_i32_0 : i32, i32
  }
  func.func @transform_3(%arg0: i32, %arg1: i32) -> (i32, i32) {
    %c0_i32 = arith.constant 0 : i32
    %c0_i32_0 = arith.constant 0 : i32
    return %arg0, %c0_i32 : i32, i32
  }
}

</mosaic_0001>

<llo_original>
// kernel: tpu_custom_call.1
$region0: #{tpu_custom_call.1}
  #allocation0 [shape = 'u32[]', space=smem, size = 0x4, offset = 0x4, fixed_abs, tag = 'smem constant byte address 0x4 - core index']
  #allocation1 [shape = 'u32[144,128]{1,0:T(1,128)}', space=vmem, size = 0x12000, scoped, tag = 'internal scratch']
  #allocation2 [shape = 'f32[16,128]{1,0:T(8,128)}', space=vmem, size = 0x2000, scoped, tag = 'scratch operand']
  %s0 = inlined_call_operand.hbm [shape: f32[16,128], index: 0, kind: input, shape index: {}]
  %s1 = inlined_call_operand.hbm [shape: f32[128,128], index: 1, kind: input, shape index: {}]
  %s2 = inlined_call_operand.hbm [shape: f32[128,128], index: 2, kind: input, shape index: {}]
  %s3 = inlined_call_operand.hbm [shape: f32[16,128], index: 3, kind: output, shape index: {}]
  %s4 = sld [smem:[#allocation0]]
  $region42: #{tpu_custom_call.1} parent=0
    _
  %s6 = ssub.s32 1, %s4
  %s7 = scalar_select 0, %s6, %s4
  $region1: #{tpu_custom_call.1} parent=0
    #allocation3 [shape = 'u8[8192]{0}', space=vmem, size = 0x2000, scoped, tag = 'input window, operand 0, single buffered']
    #allocation4 [shape = 's32[1]{0}', space=sflag, size = 0x4, scoped, tag = 'scoped memory for tpu_custom_call.1']
    #allocation5 [shape = 's32[1]{0}', space=sflag, size = 0x4, scoped, tag = 'scoped memory for tpu_custom_call.1']
    #allocation6 [shape = 'u8[65536]{0}', space=vmem, size = 0x10000, scoped, tag = 'input window, operand 1, single buffered']
    #allocation7 [shape = 's32[1]{0}', space=sflag, size = 0x4, scoped, tag = 'scoped memory for tpu_custom_call.1']
    #allocation8 [shape = 'u8[65536]{0}', space=vmem, size = 0x10000, scoped, tag = 'input window, operand 2, single buffered']
    #allocation9 [shape = 'u8[8192]{0}', space=vmem, size = 0x2000, scoped, tag = 'output window, operand 0, single buffered']
    %8 = vsyncpa [#allocation4], 0
    %9 = vsyncpa [#allocation7], 0
    %10 = vsyncpa [#allocation5], 0
    // Predicated region
    $region2: #{tpu_custom_call.1} parent=1 // pred_check
      _
    $region3: #{tpu_custom_call.1} parent=1 // pred_check_branch
      %12 = sbr.rel (0) target = $region5
    $region4: #{tpu_custom_call.1} parent=1 // pred_region
      %s14 = ssub.s32 256, 256
      %15 = vsyncadd [#allocation4], %s14
      %s16 = sshll.u32 [#allocation3], 4
      %s17 = int_to_ptr.vmem [resolvable:$true] %s16
      %22 = dma.hbm_to_vmem [thread:$0]  %s0, 256, %s17, [#allocation4], 128, 128, 8
    $region5: #{tpu_custom_call.1} parent=1 // pred_fallthru
      _
    // Predicated region
    $region6: #{tpu_custom_call.1} parent=1 // pred_check
      _
    $region7: #{tpu_custom_call.1} parent=1 // pred_check_branch
      %24 = sbr.rel (0) target = $region9
    $region8: #{tpu_custom_call.1} parent=1 // pred_region
      %s26 = ssub.s32 2048, 2048
      %27 = vsyncadd [#allocation7], %s26
      %s28 = sshll.u32 [#allocation6], 4
      %s29 = int_to_ptr.vmem [resolvable:$true] %s28
      %34 = dma.hbm_to_vmem [thread:$0]  %s1, 2048, %s29, [#allocation7], 128, 128, 8
    $region9: #{tpu_custom_call.1} parent=1 // pred_fallthru
      _
    // Predicated region
    $region10: #{tpu_custom_call.1} parent=1 // pred_check
      _
    $region11: #{tpu_custom_call.1} parent=1 // pred_check_branch
      %36 = sbr.rel (0) target = $region13
    $region12: #{tpu_custom_call.1} parent=1 // pred_region
      %s38 = ssub.s32 2048, 2048
      %39 = vsyncadd [#allocation7], %s38
      %s40 = sshll.u32 [#allocation8], 4
      %s41 = int_to_ptr.vmem [resolvable:$true] %s40
      %46 = dma.hbm_to_vmem [thread:$0]  %s2, 2048, %s41, [#allocation7], 128, 128, 8
    $region13: #{tpu_custom_call.1} parent=1 // pred_fallthru
      _
    // Predicated region
    $region14: #{tpu_custom_call.1} parent=1 // pred_check
      _
    $region15: #{tpu_custom_call.1} parent=1 // pred_check_branch
      %48 = sbr.rel (0) target = $region17
    $region16: #{tpu_custom_call.1} parent=1 // pred_region
      %49 = dma.done [#allocation4], 256
    $region17: #{tpu_custom_call.1} parent=1 // pred_fallthru
      _
    // Predicated region
    $region18: #{tpu_custom_call.1} parent=1 // pred_check
      _
    $region19: #{tpu_custom_call.1} parent=1 // pred_check_branch
      %51 = sbr.rel (0) target = $region21
    $region20: #{tpu_custom_call.1} parent=1 // pred_region
      %52 = dma.done [#allocation7], 2048
    $region21: #{tpu_custom_call.1} parent=1 // pred_fallthru
      _
    // Predicated region
    $region22: #{tpu_custom_call.1} parent=1 // pred_check
      _
    $region23: #{tpu_custom_call.1} parent=1 // pred_check_branch
      %54 = sbr.rel (0) target = $region25
    $region24: #{tpu_custom_call.1} parent=1 // pred_region
      %55 = dma.done [#allocation7], 2048
    $region25: #{tpu_custom_call.1} parent=1 // pred_fallthru
      _
    %p56 = scmp.eq.s32.totalorder 0, 0
    // Predicated region
    $region26: #{tpu_custom_call.1} parent=1 // pred_check
      %p57 = pneg %p56
    $region27: #{tpu_custom_call.1} parent=1 // pred_check_branch
      %59 = sbr.rel (%p57) target = $region29
    $region28: #{tpu_custom_call.1} parent=1 // pred_region
      %60 = vst [vmem:[#allocation2] sm:$0xff] 0.0
      %61 = vst [vmem:[#allocation2 + $0x8] sm:$0xff] 0.0
    $region29: #{tpu_custom_call.1} parent=1 // pred_fallthru
      _
    %s62 = smul.u32 0, 128
    %s63 = scalar_lea.vmem [#allocation6], %s62
    %v64 = vld [vmem:[%s63] sm:$0xff]
    %v65 = vld [vmem:[%s63 + $0x8] sm:$0xff]
    %v66 = vld [vmem:[%s63 + $0x10] sm:$0xff]
    %v67 = vld [vmem:[%s63 + $0x18] sm:$0xff]
    %v68 = vld [vmem:[%s63 + $0x20] sm:$0xff]
    %v69 = vld [vmem:[%s63 + $0x28] sm:$0xff]
    %v70 = vld [vmem:[%s63 + $0x30] sm:$0xff]
    %v71 = vld [vmem:[%s63 + $0x38] sm:$0xff]
    %v72 = vld [vmem:[%s63 + $0x40] sm:$0xff]
    %v73 = vld [vmem:[%s63 + $0x48] sm:$0xff]
    %v74 = vld [vmem:[%s63 + $0x50] sm:$0xff]
    %v75 = vld [vmem:[%s63 + $0x58] sm:$0xff]
    %v76 = vld [vmem:[%s63 + $0x60] sm:$0xff]
    %v77 = vld [vmem:[%s63 + $0x68] sm:$0xff]
    %v78 = vld [vmem:[%s63 + $0x70] sm:$0xff]
    %v79 = vld [vmem:[%s63 + $0x78] sm:$0xff]
    %v80 = vld [vmem:[#allocation2] sm:$0xff]
    %v81 = vld [vmem:[#allocation2 + $0x8] sm:$0xff]
    %v82 = vld [vmem:[#allocation3] sm:$0xff]
    %v83 = vld [vmem:[#allocation3 + $0x8] sm:$0xff]
    %84 = vmatprep.subr.mxu0 0.0
    %85 = vmatpush1.msra.mxu0 %v79
    %86 = vmatprep.subr.mxu0 0.0
    %87 = vmatpush1.msra.mxu0 %v78
    %88 = vmatprep.subr.mxu0 0.0
    %89 = vmatpush1.msra.mxu0 %v77
    %90 = vmatprep.subr.mxu0 0.0
    %91 = vmatpush1.msra.mxu0 %v76
    %92 = vmatprep.subr.mxu0 0.0
    %93 = vmatpush1.msra.mxu0 %v75
    %94 = vmatprep.subr.mxu0 0.0
    %95 = vmatpush1.msra.mxu0 %v74
    %96 = vmatprep.subr.mxu0 0.0
    %97 = vmatpush1.msra.mxu0 %v73
    %98 = vmatprep.subr.mxu0 0.0
    %99 = vmatpush1.msra.mxu0 %v72
    %100 = vmatprep.subr.mxu0 0.0
    %101 = vmatpush1.msra.mxu0 %v71
    %102 = vmatprep.subr.mxu0 0.0
    %103 = vmatpush1.msra.mxu0 %v70
    %104 = vmatprep.subr.mxu0 0.0
    %105 = vmatpush1.msra.mxu0 %v69
    %106 = vmatprep.subr.mxu0 0.0
    %107 = vmatpush1.msra.mxu0 %v68
    %108 = vmatprep.subr.mxu0 0.0
    %109 = vmatpush1.msra.mxu0 %v67
    %110 = vmatprep.subr.mxu0 0.0
    %111 = vmatpush1.msra.mxu0 %v66
    %112 = vmatprep.subr.mxu0 0.0
    %113 = vmatpush1.msra.mxu0 %v65
    %114 = vmatprep.subr.mxu0 0.0
    %115 = vmatpush1.msra.mxu0 %v64
    %116 = vmatprep.subr.mxu0 0.0
    %117 = vmatpush2.msra.mxu0 0.0
    %118 = vmatprep.subr.mxu0 0.0
    %119 = vmatpush2.msra.mxu0 0.0
    %120 = vmatprep.subr.mxu0 0.0
    %121 = vmatpush2.msra.mxu0 0.0
    %122 = vmatprep.subr.mxu0 0.0
    %123 = vmatpush2.msra.mxu0 0.0
    %124 = vmatprep.subr.mxu0 0.0
    %125 = vmatpush2.msra.mxu0 0.0
    %126 = vmatprep.subr.mxu0 0.0
    %127 = vmatpush2.msra.mxu0 0.0
    %128 = vmatprep.subr.mxu0 0.0
    %129 = vmatpush2.msra.mxu0 0.0
    %130 = vmatprep.subr.mxu0 0.0
    %131 = vmatpush2.msra.mxu0 0.0
    %132 = vmatprep.subr.mxu0 0.0
    %133 = vmatpush2.msra.mxu0 0.0
    %134 = vmatprep.subr.mxu0 0.0
    %135 = vmatpush2.msra.mxu0 0.0
    %136 = vmatprep.subr.mxu0 0.0
    %137 = vmatpush2.msra.mxu0 0.0
    %138 = vmatprep.subr.mxu0 0.0
    %139 = vmatpush2.msra.mxu0 0.0
    %140 = vmatprep.subr.mxu0 0.0
    %141 = vmatpush2.msra.mxu0 0.0
    %142 = vmatprep.subr.mxu0 0.0
    %143 = vmatpush2.msra.mxu0 0.0
    %144 = vmatprep.subr.mxu0 0.0
    %145 = vmatpush2.msra.mxu0 0.0
    %146 = vmatprep.subr.mxu0 0.0
    %147 = vmatpush2.msra.mxu0 0.0
    %148 = vmatprep.mubr.f32.mxu0 0.0
    %149 = vmatmul.mubr.f32.gmra.mxu0 %v82
    %v150 = vpop.f32.mrf.mxu0
    %v151 = vadd.f32 0.0, %v150
    %v152 = vpop.f32.mrf.mxu0
    %153 = vmatprep.mubr.f32.mxu0 0.0
    %154 = vmatmul.mubr.f32.gmra.mxu0 %v83
    %v155 = vpop.f32.mrf.mxu0
    %v156 = vadd.f32 0.0, %v155
    %v157 = vpop.f32.mrf.mxu0
    %158 = vdwg.mxu0
    %v159 = vadd.f32 %v80, %v151
    %v160 = vadd.f32 %v81, %v156
    %161 = vst [vmem:[#allocation2] sm:$0xff] %v159
    %162 = vst [vmem:[#allocation2 + $0x8] sm:$0xff] %v160
    // Predicated region
    $region30: #{tpu_custom_call.1} parent=1 // pred_check
      %p163 = pneg %p56
    $region31: #{tpu_custom_call.1} parent=1 // pred_check_branch
      %165 = sbr.rel (%p163) target = $region33
    $region32: #{tpu_custom_call.1} parent=1 // pred_region
      %v166 = vld [vmem:[#allocation2] sm:$0xff]
      %v167 = vld [vmem:[#allocation2 + $0x8] sm:$0xff]
      %v168 = vld [vmem:[#allocation8] sm:$0xff]
      %v169 = vld [vmem:[#allocation8 + $0x8] sm:$0xff]
      %v170 = vld [vmem:[#allocation8 + $0x10] sm:$0xff]
      %v171 = vld [vmem:[#allocation8 + $0x18] sm:$0xff]
      %v172 = vld [vmem:[#allocation8 + $0x20] sm:$0xff]
      %v173 = vld [vmem:[#allocation8 + $0x28] sm:$0xff]
      %v174 = vld [vmem:[#allocation8 + $0x30] sm:$0xff]
      %v175 = vld [vmem:[#allocation8 + $0x38] sm:$0xff]
      %v176 = vld [vmem:[#allocation8 + $0x40] sm:$0xff]
      %v177 = vld [vmem:[#allocation8 + $0x48] sm:$0xff]
      %v178 = vld [vmem:[#allocation8 + $0x50] sm:$0xff]
      %v179 = vld [vmem:[#allocation8 + $0x58] sm:$0xff]
      %v180 = vld [vmem:[#allocation8 + $0x60] sm:$0xff]
      %v181 = vld [vmem:[#allocation8 + $0x68] sm:$0xff]
      %v182 = vld [vmem:[#allocation8 + $0x70] sm:$0xff]
      %v183 = vld [vmem:[#allocation8 + $0x78] sm:$0xff]
      %184 = vmatprep.subr.mxu0 0.0
      %185 = vmatpush1.msra.mxu0 %v183
      %186 = vmatprep.subr.mxu0 0.0
      %187 = vmatpush1.msra.mxu0 %v182
      %188 = vmatprep.subr.mxu0 0.0
      %189 = vmatpush1.msra.mxu0 %v181
      %190 = vmatprep.subr.mxu0 0.0
      %191 = vmatpush1.msra.mxu0 %v180
      %192 = vmatprep.subr.mxu0 0.0
      %193 = vmatpush1.msra.mxu0 %v179
      %194 = vmatprep.subr.mxu0 0.0
      %195 = vmatpush1.msra.mxu0 %v178
      %196 = vmatprep.subr.mxu0 0.0
      %197 = vmatpush1.msra.mxu0 %v177
      %198 = vmatprep.subr.mxu0 0.0
      %199 = vmatpush1.msra.mxu0 %v176
      %200 = vmatprep.subr.mxu0 0.0
      %201 = vmatpush1.msra.mxu0 %v175
      %202 = vmatprep.subr.mxu0 0.0
      %203 = vmatpush1.msra.mxu0 %v174
      %204 = vmatprep.subr.mxu0 0.0
      %205 = vmatpush1.msra.mxu0 %v173
      %206 = vmatprep.subr.mxu0 0.0
      %207 = vmatpush1.msra.mxu0 %v172
      %208 = vmatprep.subr.mxu0 0.0
      %209 = vmatpush1.msra.mxu0 %v171
      %210 = vmatprep.subr.mxu0 0.0
      %211 = vmatpush1.msra.mxu0 %v170
      %212 = vmatprep.subr.mxu0 0.0
      %213 = vmatpush1.msra.mxu0 %v169
      %214 = vmatprep.subr.mxu0 0.0
      %215 = vmatpush1.msra.mxu0 %v168
      %216 = vmatprep.subr.mxu0 0.0
      %217 = vmatpush2.msra.mxu0 0.0
      %218 = vmatprep.subr.mxu0 0.0
      %219 = vmatpush2.msra.mxu0 0.0
      %220 = vmatprep.subr.mxu0 0.0
      %221 = vmatpush2.msra.mxu0 0.0
      %222 = vmatprep.subr.mxu0 0.0
      %223 = vmatpush2.msra.mxu0 0.0
      %224 = vmatprep.subr.mxu0 0.0
      %225 = vmatpush2.msra.mxu0 0.0
      %226 = vmatprep.subr.mxu0 0.0
      %227 = vmatpush2.msra.mxu0 0.0
      %228 = vmatprep.subr.mxu0 0.0
      %229 = vmatpush2.msra.mxu0 0.0
      %230 = vmatprep.subr.mxu0 0.0
      %231 = vmatpush2.msra.mxu0 0.0
      %232 = vmatprep.subr.mxu0 0.0
      %233 = vmatpush2.msra.mxu0 0.0
      %234 = vmatprep.subr.mxu0 0.0
      %235 = vmatpush2.msra.mxu0 0.0
      %236 = vmatprep.subr.mxu0 0.0
      %237 = vmatpush2.msra.mxu0 0.0
      %238 = vmatprep.subr.mxu0 0.0
      %239 = vmatpush2.msra.mxu0 0.0
      %240 = vmatprep.subr.mxu0 0.0
      %241 = vmatpush2.msra.mxu0 0.0
      %242 = vmatprep.subr.mxu0 0.0
      %243 = vmatpush2.msra.mxu0 0.0
      %244 = vmatprep.subr.mxu0 0.0
      %245 = vmatpush2.msra.mxu0 0.0
      %246 = vmatprep.subr.mxu0 0.0
      %247 = vmatpush2.msra.mxu0 0.0
      %248 = vmatprep.mubr.f32.mxu0 0.0
      %249 = vmatmul.mubr.f32.gmra.mxu0 %v166
      %v250 = vpop.f32.mrf.mxu0
      %v251 = vadd.f32 0.0, %v250
      %v252 = vpop.f32.mrf.mxu0
      %253 = vmatprep.mubr.f32.mxu0 0.0
      %254 = vmatmul.mubr.f32.gmra.mxu0 %v167
      %v255 = vpop.f32.mrf.mxu0
      %v256 = vadd.f32 0.0, %v255
      %v257 = vpop.f32.mrf.mxu0
      %258 = vdwg.mxu0
      %v259 = vmul.f32 %v251, 2.0
      %v260 = vmul.f32 %v256, 2.0
      %261 = vst [vmem:[#allocation9] sm:$0xff] %v259
      %262 = vst [vmem:[#allocation9 + $0x8] sm:$0xff] %v260
    $region33: #{tpu_custom_call.1} parent=1 // pred_fallthru
      _
    // Predicated region
    $region34: #{tpu_custom_call.1} parent=1 // pred_check
      _
    $region35: #{tpu_custom_call.1} parent=1 // pred_check_branch
      %264 = sbr.rel (0) target = $region37
    $region36: #{tpu_custom_call.1} parent=1 // pred_region
      %s266 = ssub.s32 256, 256
      %267 = vsyncadd [#allocation5], %s266
      %s268 = sshll.u32 [#allocation9], 4
      %s269 = int_to_ptr.vmem [resolvable:$true] %s268
      %274 = dma.vmem_to_hbm [thread:$0]  %s269, 256, %s3, [#allocation5], 128, 128, 8
    $region37: #{tpu_custom_call.1} parent=1 // pred_fallthru
      _
    // Predicated region
    $region38: #{tpu_custom_call.1} parent=1 // pred_check
      _
    $region39: #{tpu_custom_call.1} parent=1 // pred_check_branch
      %276 = sbr.rel (0) target = $region41
    $region40: #{tpu_custom_call.1} parent=1 // pred_region
      %277 = dma.done [#allocation5], 256
    $region41: #{tpu_custom_call.1} parent=1 // pred_fallthru
      _
    %278 = vsyncpa [#allocation4], 1
    %279 = vsyncpa [#allocation7], 1
    %280 = vsyncpa [#allocation5], 1

</llo_original>
